<compile_context>
chip_gen: v5e
topology: v5e:2x2
jax: 0.10.0
libtpu: 0.0.40
codegen_flags: <defaults>
</compile_context>

<pallas_src>
import math

import jax
import jax.numpy as jnp
from jax.experimental import pallas as pl
from jax.experimental.pallas import tpu as pltpu


def _round_up(x, m):
    return ((x + m - 1) // m) * m


def _pick_row_tile(n, preferred=512):
    """Row tile: up to `preferred` rows (amortizes ~0.35us/step), multiple of 8."""
    t = min(preferred, _round_up(n, 8))
    return max(8, _round_up(t, 8))


def _vmem_limit(bytes_needed):
    """2x headroom over the static tile estimate; safe on v5e/v6e/v7x."""
    return int(min(64 * 1024 * 1024, max(32 * 1024 * 1024, 2 * bytes_needed)))


# --------------------------------------------------------------------------- #
# SGC_Agg: one propagation hop   out = norm * (A @ (norm * feat))
# Grid: (row tiles, source/reduction tiles); f32 accumulator in VMEM scratch.
# --------------------------------------------------------------------------- #
def _agg_kernel(a_ref, feat_ref, norm_src_ref, norm_dst_ref, o_ref, acc_ref):
    kk = pl.program_id(1)

    @pl.when(kk == 0)
    def _():
        acc_ref[...] = jnp.zeros_like(acc_ref)

    # Pre-scale the streamed source-feature tile (VPU; hides under MXU/DMA).
    scaled = feat_ref[...] * norm_src_ref[...]                            # [tk, D]
    # Partial aggregation over this source tile (MXU, f32 accumulate).
    acc_ref[...] += jnp.dot(a_ref[...], scaled,
                            preferred_element_type=jnp.float32)          # [tn, D]

    @pl.when(kk == pl.num_programs(1) - 1)
    def _():
        # Post-scale destination rows and write the lane-dense output tile.
        o_ref[...] = (acc_ref[...] * norm_dst_ref[...]).astype(o_ref.dtype)


def _sgc_agg_hop(adj_p, feat_p, norm_p, *, tile_n, tile_k):
    Np, D = feat_p.shape
    grid = (Np // tile_n, Np // tile_k)
    flops = 2 * Np * Np * D + 2 * Np * D
    # A read once; feat re-streamed once per row tile; out written once.
    bytes_accessed = 4 * (Np * Np + (Np // tile_n) * Np * D + Np * D + 2 * Np)
    vmem = 4 * (2 * tile_n * tile_k        # A tile, double-buffered
                + 2 * tile_k * D           # feat tile, double-buffered
                + 2 * tile_n * D           # out tile, double-buffered
                + tile_n * D               # accumulator scratch
                + 2 * (tile_k + tile_n))   # norm tiles
    return pl.pallas_call(
        _agg_kernel,
        out_shape=jax.ShapeDtypeStruct((Np, D), feat_p.dtype),
        grid=grid,
        in_specs=[
            pl.BlockSpec((tile_n, tile_k), lambda i, kk: (i, kk)),  # A tile (streamed)
            pl.BlockSpec((tile_k, D), lambda i, kk: (kk, 0)),       # feat tile (streamed)
            pl.BlockSpec((tile_k, 1), lambda i, kk: (kk, 0)),       # norm (pre-scale)
            pl.BlockSpec((tile_n, 1), lambda i, kk: (i, 0)),        # norm (post-scale)
        ],
        out_specs=pl.BlockSpec((tile_n, D), lambda i, kk: (i, 0)),
        scratch_shapes=[pltpu.VMEM((tile_n, D), jnp.float32)],
        compiler_params=pltpu.CompilerParams(
            dimension_semantics=("parallel", "arbitrary"),
            vmem_limit_bytes=_vmem_limit(vmem),
        ),
        cost_estimate=pl.CostEstimate(
            flops=flops, transcendentals=0, bytes_accessed=bytes_accessed),
    )(adj_p, feat_p, norm_p, norm_p)


# --------------------------------------------------------------------------- #
# feat_trans: Linear -> ReLU -> Linear, then task mask (fused MLP head)
# --------------------------------------------------------------------------- #
def _mlp_kernel(x_ref, w1_ref, b1_ref, w2_ref, b2_ref, mask_ref, o_ref):
    x = x_ref[...]                                                         # [T, Dp]
    h = jnp.dot(x, w1_ref[...], preferred_element_type=jnp.float32)       # [T, Hp]
    h = jnp.maximum(h + b1_ref[...], 0.0)
    # TODO(synk): BatchNorm1d (bn=True) and training-mode dropout not implemented;
    #             both are identity in this eval-mode forward configuration.
    logits = jnp.dot(h.astype(w2_ref.dtype), w2_ref[...],
                     preferred_element_type=jnp.float32)                   # [T, Cp]
    o_ref[...] = ((logits + b2_ref[...]) * mask_ref[...]).astype(o_ref.dtype)


def _feat_trans(feat_p, w1, b1_2d, w2, b2_2d, mask_2d, *, tile_n):
    Np, D = feat_p.shape
    H = w1.shape[1]
    C = w2.shape[1]
    grid = (Np // tile_n,)
    flops = 2 * Np * D * H + 2 * Np * H * C
    bytes_accessed = 4 * (Np * D + D * H + H + H * C + 2 * C + Np * C)
    vmem = 4 * (2 * tile_n * D + D * H + H * C + 2 * tile_n * C
                + tile_n * H + 2 * (H + 2 * C))
    return pl.pallas_call(
        _mlp_kernel,
        out_shape=jax.ShapeDtypeStruct((Np, C), feat_p.dtype),
        grid=grid,
        in_specs=[
            pl.BlockSpec((tile_n, D), lambda i: (i, 0)),    # feat row tile (streamed)
            pl.BlockSpec((D, H), lambda i: (0, 0)),         # W1 (resident)
            pl.BlockSpec((1, H), lambda i: (0, 0)),         # b1
            pl.BlockSpec((H, C), lambda i: (0, 0)),         # W2
            pl.BlockSpec((1, C), lambda i: (0, 0)),         # b2
            pl.BlockSpec((1, C), lambda i: (0, 0)),         # task mask
        ],
        out_specs=pl.BlockSpec((tile_n, C), lambda i: (i, 0)),
        compiler_params=pltpu.CompilerParams(
            dimension_semantics=("parallel",),
            vmem_limit_bytes=_vmem_limit(vmem),
        ),
        cost_estimate=pl.CostEstimate(
            flops=flops, transcendentals=0, bytes_accessed=bytes_accessed),
    )(feat_p, w1, b1_2d, w2, b2_2d, mask_2d)


# --------------------------------------------------------------------------- #
# Full SGC forward
# --------------------------------------------------------------------------- #
def sgc_forward(adj, x, params, *, k=1, tasks=None, tile_n=None):
    """adj: [N, N] dense adjacency, adj[dst, src] = 1 for edge src->dst.
    x: [N, D] node features. params = (w1, b1, w2, b2) with w1:[D,H], w2:[H,C].
    Returns (logits [N, C], e_list) mirroring SGC.forward (twp=False -> e_list=[])."""
    w1, b1, w2, b2 = params
    N, D = x.shape
    H = w1.shape[1]
    C = w2.shape[1]

    # Symmetric normalization from in-degrees (clamped to 1, as in the module).
    deg = jnp.maximum(jnp.sum(adj, axis=1), 1.0)
    norm = (deg ** -0.5).reshape(N, 1).astype(x.dtype)

    if tile_n is None:
        tile_n = _pick_row_tile(N)
    tile_n = max(8, _round_up(tile_n, 8))
    tile_k = tile_n
    Np = _round_up(N, tile_n)

    # Lane-dense feature dims: pad D/H/C to multiples of 128 so every kernel output
    # writes full (unmasked) 128-lane stores.  Zero padding is numerically inert.
    Dp = _round_up(D, 128)
    Hp = _round_up(H, 128)
    Cp = _round_up(C, 128)

    # Pad the node dimension so row/source tiles divide evenly (zero rows/cols
    # contribute nothing; padded norm=1 keeps the scaling harmless).
    adj_p = jnp.pad(adj, ((0, Np - N), (0, Np - N)))
    feat = jnp.pad(x, ((0, Np - N), (0, Dp - D)))
    norm_p = jnp.pad(norm, ((0, Np - N), (0, 0)), constant_values=1.0)

    # k propagation hops (SGC_Agg).
    for _ in range(k):
        feat = _sgc_agg_hop(adj_p, feat, norm_p, tile_n=tile_n, tile_k=tile_k)

    # Zero-padded MLP parameters (padded rows/cols do not change the real logits).
    w1_p = jnp.pad(w1.astype(x.dtype), ((0, Dp - D), (0, Hp - H)))
    b1_p = jnp.pad(b1.astype(x.dtype).reshape(1, -1), ((0, 0), (0, Hp - H)))
    w2_p = jnp.pad(w2.astype(x.dtype), ((0, Hp - H), (0, Cp - C)))
    b2_p = jnp.pad(b2.astype(x.dtype).reshape(1, -1), ((0, 0), (0, Cp - C)))

    # Task mask: cls=None -> all ones (identity), else one-hot over selected classes.
    if tasks is None:
        mask = jnp.ones((1, C), x.dtype)
    else:
        mask = jnp.zeros((1, C), x.dtype).at[0, jnp.asarray(tasks)].set(1.0)
    mask_p = jnp.pad(mask, ((0, 0), (0, Cp - C)))

    logits = _feat_trans(feat, w1_p, b1_p, w2_p, b2_p, mask_p, tile_n=tile_n)
    logits = logits[:N, :C]

    # TODO(synk): TWP edge-attention branch (graph.apply_edges + edge_softmax) not
    #             implemented; module only uses it when twp=True.
    e_list = []
    return logits, e_list


# --------------------------------------------------------------------------- #
if __name__ == "__main__":
    key = jax.random.PRNGKey(0)
    k_adj, k_x, k_w1, k_b1, k_w2, k_b2 = jax.random.split(key, 6)

    # Small shapes: N nodes, D input feats, H hidden, C classes, k hops.
    N, D, H, C, K = 256, 64, 64, 16, 2

    # Random sparse-ish adjacency with self loops (guarantees no 0-in-degree nodes).
    adj = (jax.random.uniform(k_adj, (N, N)) < 0.05).astype(jnp.float32)
    adj = jnp.maximum(adj, jnp.eye(N, dtype=jnp.float32))
    assert bool(jnp.all(jnp.sum(adj, axis=1) > 0))  # zero-in-degree check

    x = jax.random.normal(k_x, (N, D), dtype=jnp.float32)

    # nn.Linear-style init (uniform +/- 1/sqrt(fan_in)); weights stored pre-transposed.
    b1_bound = 1.0 / math.sqrt(D)
    b2_bound = 1.0 / math.sqrt(H)
    w1 = jax.random.uniform(k_w1, (D, H), jnp.float32, -b1_bound, b1_bound)
    b1 = jax.random.uniform(k_b1, (H,), jnp.float32, -b1_bound, b1_bound)
    w2 = jax.random.uniform(k_w2, (H, C), jnp.float32, -b2_bound, b2_bound)
    b2 = jax.random.uniform(k_b2, (C,), jnp.float32, -b2_bound, b2_bound)

    # tile_n=128 -> 2x2 agg grid (exercises the accumulator init/finalize path)
    # and a 2-tile parallel MLP grid.
    logits, e_list = sgc_forward(adj, x, (w1, b1, w2, b2), k=K, tile_n=128)
    logits = jax.block_until_ready(logits)

    # Plain-JAX reference (highest-precision matmuls); dropout/BN/mask are identity.
    deg = jnp.maximum(jnp.sum(adj, axis=1), 1.0)
    nrm = (deg ** -0.5)[:, None]
    feat = x
    for _ in range(K):
        feat = jnp.matmul(adj, feat * nrm, precision=jax.lax.Precision.HIGHEST) * nrm
    hid = jnp.maximum(jnp.matmul(feat, w1, precision=jax.lax.Precision.HIGHEST) + b1, 0.0)
    ref = jnp.matmul(hid, w2, precision=jax.lax.Precision.HIGHEST) + b2

    assert logits.shape == (N, C)
    assert e_list == []
    assert jnp.allclose(logits, ref, atol=1e-3, rtol=1e-3), \
        float(jnp.max(jnp.abs(logits - ref)))

    print("KERNEL_OK")
</pallas_src>

<mosaic_0001>
module attributes {stable_mosaic.version = 11 : i64} {
  func.func @_agg_kernel(%arg0: i32, %arg1: i32, %arg2: memref<128x128xf32, #tpu.memory_space<vmem>>, %arg3: memref<128x128xf32, #tpu.memory_space<vmem>>, %arg4: memref<128x1xf32, #tpu.memory_space<vmem>>, %arg5: memref<128x1xf32, #tpu.memory_space<vmem>>, %arg6: memref<128x128xf32, #tpu.memory_space<vmem>>, %arg7: memref<128x128xf32, #tpu.memory_space<vmem>>) attributes {dimension_semantics = [#tpu.dimension_semantics<parallel>, #tpu.dimension_semantics<arbitrary>], iteration_bounds = array<i64: 2, 2>, scalar_prefetch = 0 : i64, scratch_operands = 1 : i64, tpu.core_type = #tpu.core_type<tc>, window_params = [{transform_indices = @transform_0, window_bounds = array<i64: 128, 128>}, {transform_indices = @transform_1, window_bounds = array<i64: 128, 128>}, {transform_indices = @transform_2, window_bounds = array<i64: 128, 1>}, {transform_indices = @transform_3, window_bounds = array<i64: 128, 1>}, {transform_indices = @transform_4, window_bounds = array<i64: 128, 128>}]} {
    %c0_i32 = arith.constant 0 : i32
    %0 = arith.cmpi eq, %arg1, %c0_i32 : i32
    %1 = arith.extui %0 : i1 to i32
    %c0_i32_0 = arith.constant 0 : i32
    %2 = arith.cmpi ne, %1, %c0_i32_0 : i32
    scf.if %2 {
      %cst_11 = arith.constant 0.000000e+00 : f32
      %15 = vector.broadcast %cst_11 : f32 to vector<128x128xf32>
      %c0_12 = arith.constant 0 : index
      %c0_13 = arith.constant 0 : index
      %16 = vector.load %arg7[%c0_12, %c0_13] : memref<128x128xf32, #tpu.memory_space<vmem>>, vector<128x128xf32>
      tpu.vector_store %arg7[%c0_12, %c0_13], %15 {strides = array<i32>} : memref<128x128xf32, #tpu.memory_space<vmem>>, vector<128x128xf32>,
    } else {
    }
    %c0 = arith.constant 0 : index
    %c0_1 = arith.constant 0 : index
    %3 = vector.load %arg3[%c0, %c0_1] : memref<128x128xf32, #tpu.memory_space<vmem>>, vector<128x128xf32>
    %c0_2 = arith.constant 0 : index
    %c0_3 = arith.constant 0 : index
    %4 = vector.load %arg4[%c0_2, %c0_3] : memref<128x1xf32, #tpu.memory_space<vmem>>, vector<128x1xf32>
    %5 = vector.broadcast %4 : vector<128x1xf32> to vector<128x128xf32>
    %6 = arith.mulf %3, %5 : vector<128x128xf32>
    %c0_4 = arith.constant 0 : index
    %c0_5 = arith.constant 0 : index
    %7 = vector.load %arg7[%c0_4, %c0_5] : memref<128x128xf32, #tpu.memory_space<vmem>>, vector<128x128xf32>
    %c0_6 = arith.constant 0 : index
    %c0_7 = arith.constant 0 : index
    %8 = vector.load %arg2[%c0_6, %c0_7] : memref<128x128xf32, #tpu.memory_space<vmem>>, vector<128x128xf32>
    %cst = arith.constant dense<0.000000e+00> : vector<128x128xf32>
    %9 = tpu.matmul %8, %6, %cst {dimension_numbers = #tpu.dot_dimension_numbers<[1], [0], [0], [1], [0, 0, 1, 1], [], []>} : vector<128x128xf32>, vector<128x128xf32>, vector<128x128xf32> -> vector<128x128xf32>
    %10 = arith.addf %7, %9 : vector<128x128xf32>
    %c0_8 = arith.constant 0 : index
    %c0_9 = arith.constant 0 : index
    %11 = vector.load %arg7[%c0_8, %c0_9] : memref<128x128xf32, #tpu.memory_space<vmem>>, vector<128x128xf32>
    tpu.vector_store %arg7[%c0_8, %c0_9], %10 {strides = array<i32>} : memref<128x128xf32, #tpu.memory_space<vmem>>, vector<128x128xf32>,
    %c1_i32 = arith.constant 1 : i32
    %12 = arith.cmpi eq, %arg1, %c1_i32 : i32
    %13 = arith.extui %12 : i1 to i32
    %c0_i32_10 = arith.constant 0 : i32
    %14 = arith.cmpi ne, %13, %c0_i32_10 : i32
    scf.if %14 {
      %c0_11 = arith.constant 0 : index
      %c0_12 = arith.constant 0 : index
      %15 = vector.load %arg7[%c0_11, %c0_12] : memref<128x128xf32, #tpu.memory_space<vmem>>, vector<128x128xf32>
      %c0_13 = arith.constant 0 : index
      %c0_14 = arith.constant 0 : index
      %16 = vector.load %arg5[%c0_13, %c0_14] : memref<128x1xf32, #tpu.memory_space<vmem>>, vector<128x1xf32>
      %17 = vector.broadcast %16 : vector<128x1xf32> to vector<128x128xf32>
      %18 = arith.mulf %15, %17 : vector<128x128xf32>
      %c0_15 = arith.constant 0 : index
      %c0_16 = arith.constant 0 : index
      %19 = vector.load %arg6[%c0_15, %c0_16] : memref<128x128xf32, #tpu.memory_space<vmem>>, vector<128x128xf32>
      tpu.vector_store %arg6[%c0_15, %c0_16], %18 {strides = array<i32>} : memref<128x128xf32, #tpu.memory_space<vmem>>, vector<128x128xf32>,
    } else {
    }
    return
  }
  func.func @transform_0(%arg0: i32, %arg1: i32) -> (i32, i32) {
    %c0_i32 = arith.constant 0 : i32
    return %arg0, %arg1 : i32, i32
  }
  func.func @transform_1(%arg0: i32, %arg1: i32) -> (i32, i32) {
    %c0_i32 = arith.constant 0 : i32
    %c0_i32_0 = arith.constant 0 : i32
    return %arg1, %c0_i32 : i32, i32
  }
  func.func @transform_2(%arg0: i32, %arg1: i32) -> (i32, i32) {
    %c0_i32 = arith.constant 0 : i32
    %c0_i32_0 = arith.constant 0 : i32
    return %arg1, %c0_i32 : i32, i32
  }
  func.func @transform_3(%arg0: i32, %arg1: i32) -> (i32, i32) {
    %c0_i32 = arith.constant 0 : i32
    %c0_i32_0 = arith.constant 0 : i32
    return %arg0, %c0_i32 : i32, i32
  }
  func.func @transform_4(%arg0: i32, %arg1: i32) -> (i32, i32) {
    %c0_i32 = arith.constant 0 : i32
    %c0_i32_0 = arith.constant 0 : i32
    return %arg0, %c0_i32 : i32, i32
  }
}

</mosaic_0001>

<llo_original>
// kernel: tpu_custom_call.1
$region0: #{tpu_custom_call.1}
  #allocation0 [shape = 'u32[]', space=smem, size = 0x4, offset = 0x4, fixed_abs, tag = 'smem constant byte address 0x4 - core index']
  #allocation1 [shape = 'u32[72,128]{1,0:T(1,128)}', space=vmem, size = 0x9000, scoped, tag = 'internal scratch']
  #allocation2 [shape = 'f32[128,128]{1,0:T(8,128)}', space=vmem, size = 0x10000, scoped, tag = 'scratch operand']
  %s0 = inlined_call_operand.vmem [shape: f32[256,256], index: 0, kind: input, shape index: {}]
  %s1 = inlined_call_operand.hbm [shape: f32[256,128], index: 1, kind: input, shape index: {}]
  %s2 = inlined_call_operand.vmem [shape: f32[256,1], index: 2, kind: input, shape index: {}]
  %s3 = inlined_call_operand.vmem [shape: f32[256,1], index: 3, kind: input, shape index: {}]
  %s4 = inlined_call_operand.hbm [shape: f32[256,128], index: 4, kind: output, shape index: {}]
  %s5 = sld [smem:[#allocation0]]
  $region99: #{tpu_custom_call.1} parent=0
    _
  %s7 = ssub.s32 1, %s5
  %s8 = scalar_select 0, %s7, %s5
  $region1: #{tpu_custom_call.1} parent=0
    #allocation3 [shape = 'u8[131072]{0}', space=vmem, size = 0x20000, scoped, tag = 'input window, operand 0']
    #allocation4 [shape = 'u8[131072]{0}', space=vmem, size = 0x20000, scoped, tag = 'input window, operand 1']
    #allocation5 [shape = 's32[2]{0}', space=sflag, size = 0x8, scoped, tag = 'scoped memory for tpu_custom_call.1']
    #allocation6 [shape = 's32[2]{0}', space=sflag, size = 0x8, scoped, tag = 'scoped memory for tpu_custom_call.1']
    #allocation7 [shape = 'u8[131072]{0}', space=vmem, size = 0x20000, scoped, tag = 'output window, operand 0']
    %9 = vsyncpa [#allocation5], 0
    %s10 = scalar_lea.sflag [#allocation5], 1
    %11 = vsyncpa %s10, 0
    %12 = vsyncpa [#allocation6], 0
    %s13 = scalar_lea.sflag [#allocation6], 1
    %14 = vsyncpa %s13, 0
    loop: start=0, step=1, limit=6
    $region2: #{tpu_custom_call.1} parent=1 // loop_pre_header
      _
    $region3: #{tpu_custom_call.1} parent=1 // loop_header
      %s16 = sphi 0, %s20
      %p17 = scmp.ge.s32.totalorder %s16, 6
      %s23 = sphi 0, %s35
      %s24 = sphi 0, %s31
      %s25 = sphi 0, %s23
      %s26 = sphi 0, %s24
      %s27 = sphi 0, %s25
      %s28 = sphi 0, %s26
      %s40 = sphi 0, %s42
      %s43 = sphi 0, %s40
      %s44 = sphi 0, %s43
      %s60 = sphi 0, %s44
      %s66 = sphi 0, %s68
      %s69 = sphi 0, %s66
      %s70 = sphi 0, %s69
      %s86 = sphi 0, %s70
      %s92 = sphi 0, %s94
      %s95 = sphi 0, %s92
      %s96 = sphi 0, %s95
      %s112 = sphi 0, %s96
      %s118 = sphi 0, %s120
      %s121 = sphi 0, %s118
      %s122 = sphi 0, %s121
      %s138 = sphi 0, %s122
      %s144 = sphi 0, %s146
      %s147 = sphi 0, %s144
      %s148 = sphi 0, %s147
      %s164 = sphi 0, %s148
    $region4: #{tpu_custom_call.1} parent=1 // loop_header_branch
      %19 = sbr.rel (%p17) target = $region8
    $region5: #{tpu_custom_call.1} parent=1 // loop_body
      %s21 = ssub.s32 %s16, 1
      %s22 = ssub.s32 %s16, 2
      %s29 = sadd.s32 1, %s24
      %p30 = scmp.ge.s32.totalorder %s29, 2
      %s31 = scalar_select %p30, 0, %s29
      %s32 = sadd.s32 1, %s23
      %s33 = scalar_select %p30, %s32, %s23
      %p34 = scmp.ge.s32.totalorder %s33, 2
      %s35 = scalar_select %p34, 0, %s33
      %s36 = ssub.s32 %s23, %s35
      %s37 = ssub.s32 %s24, %s31
      %s38 = sor.u32 %s36, %s37
      %p39 = scmp.eq.s32.totalorder %s38, 0
      %s41 = sadd.s32 %s40, 1
      %s42 = scalar_select %p39, %s40, %s41
      %p45 = pneg %p39
      %p46 = scmp.eq.s32.totalorder %s16, 3
      %p47 = por %p45, %p46
      %p48 = scmp.ne.s32.totalorder %s40, %s43
      %p49 = scmp.eq.s32.totalorder %s16, 0
      %p50 = por %p48, %p49
      %p51 = scmp.ne.s32.totalorder %s40, %s43
      %p52 = scmp.eq.s32.totalorder %s21, 3
      %p53 = por %p51, %p52
      %p54 = scmp.ne.s32.totalorder %s43, %s44
      %p55 = scmp.eq.s32.totalorder %s21, 0
      %p56 = por %p54, %p55
      %p57 = scmp.ne.s32.totalorder %s43, %s44
      %p58 = scmp.eq.s32.totalorder %s22, 3
      %p59 = por %p57, %p58
      %p61 = scmp.ne.s32.totalorder %s44, %s60
      %p62 = scmp.eq.s32.totalorder %s22, 0
      %p63 = por %p61, %p62
      %s64 = ssub.s32 %s24, %s31
      %p65 = scmp.eq.s32.totalorder %s64, 0
      %s67 = sadd.s32 %s66, 1
      %s68 = scalar_select %p65, %s66, %s67
      %p71 = pneg %p65
      %p72 = scmp.eq.s32.totalorder %s16, 3
      %p73 = por %p71, %p72
      %p74 = scmp.ne.s32.totalorder %s66, %s69
      %p75 = scmp.eq.s32.totalorder %s16, 0
      %p76 = por %p74, %p75
      %p77 = scmp.ne.s32.totalorder %s66, %s69
      %p78 = scmp.eq.s32.totalorder %s21, 3
      %p79 = por %p77, %p78
      %p80 = scmp.ne.s32.totalorder %s69, %s70
      %p81 = scmp.eq.s32.totalorder %s21, 0
      %p82 = por %p80, %p81
      %p83 = scmp.ne.s32.totalorder %s69, %s70
      %p84 = scmp.eq.s32.totalorder %s22, 3
      %p85 = por %p83, %p84
      %p87 = scmp.ne.s32.totalorder %s70, %s86
      %p88 = scmp.eq.s32.totalorder %s22, 0
      %p89 = por %p87, %p88
      %s90 = ssub.s32 %s24, %s31
      %p91 = scmp.eq.s32.totalorder %s90, 0
      %s93 = sadd.s32 %s92, 1
      %s94 = scalar_select %p91, %s92, %s93
      %p97 = pneg %p91
      %p98 = scmp.eq.s32.totalorder %s16, 3
      %p99 = por %p97, %p98
      %p100 = scmp.ne.s32.totalorder %s92, %s95
      %p101 = scmp.eq.s32.totalorder %s16, 0
      %p102 = por %p100, %p101
      %p103 = scmp.ne.s32.totalorder %s92, %s95
      %p104 = scmp.eq.s32.totalorder %s21, 3
      %p105 = por %p103, %p104
      %p106 = scmp.ne.s32.totalorder %s95, %s96
      %p107 = scmp.eq.s32.totalorder %s21, 0
      %p108 = por %p106, %p107
      %p109 = scmp.ne.s32.totalorder %s95, %s96
      %p110 = scmp.eq.s32.totalorder %s22, 3
      %p111 = por %p109, %p110
      %p113 = scmp.ne.s32.totalorder %s96, %s112
      %p114 = scmp.eq.s32.totalorder %s22, 0
      %p115 = por %p113, %p114
      %s116 = ssub.s32 %s23, %s35
      %p117 = scmp.eq.s32.totalorder %s116, 0
      %s119 = sadd.s32 %s118, 1
      %s120 = scalar_select %p117, %s118, %s119
      %p123 = pneg %p117
      %p124 = scmp.eq.s32.totalorder %s16, 3
      %p125 = por %p123, %p124
      %p126 = scmp.ne.s32.totalorder %s118, %s121
      %p127 = scmp.eq.s32.totalorder %s16, 0
      %p128 = por %p126, %p127
      %p129 = scmp.ne.s32.totalorder %s118, %s121
      %p130 = scmp.eq.s32.totalorder %s21, 3
      %p131 = por %p129, %p130
      %p132 = scmp.ne.s32.totalorder %s121, %s122
      %p133 = scmp.eq.s32.totalorder %s21, 0
      %p134 = por %p132, %p133
      %p135 = scmp.ne.s32.totalorder %s121, %s122
      %p136 = scmp.eq.s32.totalorder %s22, 3
      %p137 = por %p135, %p136
      %p139 = scmp.ne.s32.totalorder %s122, %s138
      %p140 = scmp.eq.s32.totalorder %s22, 0
      %p141 = por %p139, %p140
      %s142 = ssub.s32 %s23, %s35
      %p143 = scmp.eq.s32.totalorder %s142, 0
      %s145 = sadd.s32 %s144, 1
      %s146 = scalar_select %p143, %s144, %s145
      %p149 = pneg %p143
      %p150 = scmp.eq.s32.totalorder %s16, 3
      %p151 = por %p149, %p150
      %p152 = scmp.ne.s32.totalorder %s144, %s147
      %p153 = scmp.eq.s32.totalorder %s16, 0
      %p154 = por %p152, %p153
      %p155 = scmp.ne.s32.totalorder %s144, %s147
      %p156 = scmp.eq.s32.totalorder %s21, 3
      %p157 = por %p155, %p156
      %p158 = scmp.ne.s32.totalorder %s147, %s148
      %p159 = scmp.eq.s32.totalorder %s21, 0
      %p160 = por %p158, %p159
      %p161 = scmp.ne.s32.totalorder %s147, %s148
      %p162 = scmp.eq.s32.totalorder %s22, 3
      %p163 = por %p161, %p162
      %p165 = scmp.ne.s32.totalorder %s148, %s164
      %p166 = scmp.eq.s32.totalorder %s22, 0
      %p167 = por %p165, %p166
      %p168 = scmp.le.s32.totalorder 1, %s16
      %p169 = scmp.lt.s32.totalorder %s16, 5
      %p170 = pnand %p168, %p169
      %p171 = pneg %p170
      // Predicated region
      $region9: #{tpu_custom_call.1} parent=5 // pred_check
        _
      $region10: #{tpu_custom_call.1} parent=5 // pred_check_branch
        %173 = sbr.rel (%p170) target = $region12
      $region11: #{tpu_custom_call.1} parent=5 // pred_region
        %s174 = ssub.s32 %s16, 1
      $region12: #{tpu_custom_call.1} parent=5 // pred_fallthru
        _
      %p175 = scmp.lt.s32.totalorder %s16, 4
      // Predicated region
      $region13: #{tpu_custom_call.1} parent=5 // pred_check
        %p176 = pneg %p175
      $region14: #{tpu_custom_call.1} parent=5 // pred_check_branch
        %178 = sbr.rel (%p176) target = $region16
      $region15: #{tpu_custom_call.1} parent=5 // pred_region
        // Predicated region
        $region17: #{tpu_custom_call.1} parent=15 // pred_check
          %p179 = pneg %p50
        $region18: #{tpu_custom_call.1} parent=15 // pred_check_branch
          %181 = sbr.rel (%p179) target = $region20
        $region19: #{tpu_custom_call.1} parent=15 // pred_region
          %s182 = sand.u32 %s40, 1
          %s183 = sand.u32 %s40, 1
          %s184 = smul.addr %s183, 128
          %s185 = scalar_lea.vmem [#allocation3], %s184
          %s186 = smul.u32 16, %s23
          %s187 = smul.addr %s186, 2
          %s188 = sadd.s32 %s24, %s187
          %s189 = smul.addr %s188, 8
          %s190 = scalar_lea.vmem %s0, %s189
          // Predicated region
          $region21: #{tpu_custom_call.1} parent=19 // pred_check
            _
          $region22: #{tpu_custom_call.1} parent=19 // pred_check_branch
            %192 = sbr.rel (0) target = $region24
          $region23: #{tpu_custom_call.1} parent=19 // pred_region
            // Predicated region
            $region25: #{tpu_custom_call.1} parent=23 // pred_check
              _
            $region26: #{tpu_custom_call.1} parent=23 // pred_check_branch
              %194 = sbr.rel (0) target = $region28
            $region27: #{tpu_custom_call.1} parent=23 // pred_region
              // Predicated region
              $region40: #{tpu_custom_call.1} parent=27 // pred_check
                _
              $region41: #{tpu_custom_call.1} parent=27 // pred_check_branch
                %240 = sbr.rel (0) target = $region43
              $region42: #{tpu_custom_call.1} parent=27 // pred_region
                loop: start=0, step=1, limit=1
                $region44: #{tpu_custom_call.1} parent=42 // loop_pre_header
                  _
                $region45: #{tpu_custom_call.1} parent=42 // loop_header
                  %s242 = sphi 0, %s246
                  %p243 = scmp.ge.s32.totalorder %s242, 1
                  %s247 = sphi %s190, %s190
                  %s248 = sphi %s185, %s185
                $region46: #{tpu_custom_call.1} parent=42 // loop_header_branch
                  %245 = sbr.rel (%p243) target = $region50
                $region47: #{tpu_custom_call.1} parent=42 // loop_body
                  %v249 = vld [vmem:[%s247] sm:$0xff]
                  %250 = vst [vmem:[%s248] sm:$0xff] %v249
                  %v251 = vld [vmem:[%s247 + $0x10] sm:$0xff]
                  %252 = vst [vmem:[%s248 + $0x8] sm:$0xff] %v251
                  %v253 = vld [vmem:[%s247 + $0x20] sm:$0xff]
                  %254 = vst [vmem:[%s248 + $0x10] sm:$0xff] %v253
                  %v255 = vld [vmem:[%s247 + $0x30] sm:$0xff]
                  %256 = vst [vmem:[%s248 + $0x18] sm:$0xff] %v255
                  %v257 = vld [vmem:[%s247 + $0x40] sm:$0xff]
                  %258 = vst [vmem:[%s248 + $0x20] sm:$0xff] %v257
                  %v259 = vld [vmem:[%s247 + $0x50] sm:$0xff]
                  %260 = vst [vmem:[%s248 + $0x28] sm:$0xff] %v259
                  %v261 = vld [vmem:[%s247 + $0x60] sm:$0xff]
                  %262 = vst [vmem:[%s248 + $0x30] sm:$0xff] %v261
                  %v263 = vld [vmem:[%s247 + $0x70] sm:$0xff]
                  %264 = vst [vmem:[%s248 + $0x38] sm:$0xff] %v263
                  %v265 = vld [vmem:[%s247 + $0x80] sm:$0xff]
                  %266 = vst [vmem:[%s248 + $0x40] sm:$0xff] %v265
                  %v267 = vld [vmem:[%s247 + $0x90] sm:$0xff]
                  %268 = vst [vmem:[%s248 + $0x48] sm:$0xff] %v267
                  %v269 = vld [vmem:[%s247 + $0xa0] sm:$0xff]
                  %270 = vst [vmem:[%s248 + $0x50] sm:$0xff] %v269
                  %v271 = vld [vmem:[%s247 + $0xb0] sm:$0xff]
                  %272 = vst [vmem:[%s248 + $0x58] sm:$0xff] %v271
                  %v273 = vld [vmem:[%s247 + $0xc0] sm:$0xff]
                  %274 = vst [vmem:[%s248 + $0x60] sm:$0xff] %v273
                  %v275 = vld [vmem:[%s247 + $0xd0] sm:$0xff]
                  %276 = vst [vmem:[%s248 + $0x68] sm:$0xff] %v275
                  %v277 = vld [vmem:[%s247 + $0xe0] sm:$0xff]
                  %278 = vst [vmem:[%s248 + $0x70] sm:$0xff] %v277
                  %v279 = vld [vmem:[%s247 + $0xf0] sm:$0xff]
                  %280 = vst [vmem:[%s248 + $0x78] sm:$0xff] %v279
                $region48: #{tpu_custom_call.1} parent=42 // loop_footer
                  %s246 = sadd.s32 1, %s242
                $region49: #{tpu_custom_call.1} parent=42 // loop_footer_branch
                  %241 = sbr.rel target = $region45
                $region50: #{tpu_custom_call.1} parent=42 // loop_exit
                  _
              $region43: #{tpu_custom_call.1} parent=27 // pred_fallthru
                _
              // Predicated region
              $region51: #{tpu_custom_call.1} parent=27 // pred_check
                _
              $region52: #{tpu_custom_call.1} parent=27 // pred_check_branch
                %282 = sbr.rel target = $region54
              $region53: #{tpu_custom_call.1} parent=27 // pred_region
                _
              $region54: #{tpu_custom_call.1} parent=27 // pred_fallthru
                _
            $region28: #{tpu_custom_call.1} parent=23 // pred_fallthru
              _
            // Predicated region
            $region29: #{tpu_custom_call.1} parent=23 // pred_check
              _
            $region30: #{tpu_custom_call.1} parent=23 // pred_check_branch
              %196 = sbr.rel target = $region32
            $region31: #{tpu_custom_call.1} parent=23 // pred_region
              %s198 = ssub.s32 256, 1
              loop: start=0, step=1, limit=1
              $region33: #{tpu_custom_call.1} parent=31 // loop_pre_header
                _
              $region34: #{tpu_custom_call.1} parent=31 // loop_header
                %s200 = sphi 0, %s204
                %p201 = scmp.ge.s32.totalorder %s200, 1
                %s205 = sphi %s190, %s190
                %s206 = sphi %s185, %s185
              $region35: #{tpu_custom_call.1} parent=31 // loop_header_branch
                %203 = sbr.rel (%p201) target = $region39
              $region36: #{tpu_custom_call.1} parent=31 // loop_body
                %v207 = vld [vmem:[%s205] sm:%s198]
                %208 = vst [vmem:[%s206] sm:%s198] %v207
                %v209 = vld [vmem:[%s205 + $0x10] sm:%s198]
                %210 = vst [vmem:[%s206 + $0x8] sm:%s198] %v209
                %v211 = vld [vmem:[%s205 + $0x20] sm:%s198]
                %212 = vst [vmem:[%s206 + $0x10] sm:%s198] %v211
                %v213 = vld [vmem:[%s205 + $0x30] sm:%s198]
                %214 = vst [vmem:[%s206 + $0x18] sm:%s198] %v213
                %v215 = vld [vmem:[%s205 + $0x40] sm:%s198]
                %216 = vst [vmem:[%s206 + $0x20] sm:%s198] %v215
                %v217 = vld [vmem:[%s205 + $0x50] sm:%s198]
                %218 = vst [vmem:[%s206 + $0x28] sm:%s198] %v217
                %v219 = vld [vmem:[%s205 + $0x60] sm:%s198]
                %220 = vst [vmem:[%s206 + $0x30] sm:%s198] %v219
                %v221 = vld [vmem:[%s205 + $0x70] sm:%s198]
                %222 = vst [vmem:[%s206 + $0x38] sm:%s198] %v221
                %v223 = vld [vmem:[%s205 + $0x80] sm:%s198]
                %224 = vst [vmem:[%s206 + $0x40] sm:%s198] %v223
                %v225 = vld [vmem:[%s205 + $0x90] sm:%s198]
                %226 = vst [vmem:[%s206 + $0x48] sm:%s198] %v225
                %v227 = vld [vmem:[%s205 + $0xa0] sm:%s198]
                %228 = vst [vmem:[%s206 + $0x50] sm:%s198] %v227
                %v229 = vld [vmem:[%s205 + $0xb0] sm:%s198]
                %230 = vst [vmem:[%s206 + $0x58] sm:%s198] %v229
                %v231 = vld [vmem:[%s205 + $0xc0] sm:%s198]
                %232 = vst [vmem:[%s206 + $0x60] sm:%s198] %v231
                %v233 = vld [vmem:[%s205 + $0xd0] sm:%s198]
                %234 = vst [vmem:[%s206 + $0x68] sm:%s198] %v233
                %v235 = vld [vmem:[%s205 + $0xe0] sm:%s198]
                %236 = vst [vmem:[%s206 + $0x70] sm:%s198] %v235
                %v237 = vld [vmem:[%s205 + $0xf0] sm:%s198]
                %238 = vst [vmem:[%s206 + $0x78] sm:%s198] %v237
              $region37: #{tpu_custom_call.1} parent=31 // loop_footer
                %s204 = sadd.s32 1, %s200
              $region38: #{tpu_custom_call.1} parent=31 // loop_footer_branch
                %199 = sbr.rel target = $region34
              $region39: #{tpu_custom_call.1} parent=31 // loop_exit
                _
            $region32: #{tpu_custom_call.1} parent=23 // pred_fallthru
              _
          $region24: #{tpu_custom_call.1} parent=19 // pred_fallthru
            _
          %283 = vnop
        $region20: #{tpu_custom_call.1} parent=15 // pred_fallthru
          _
        // Predicated region
        $region55: #{tpu_custom_call.1} parent=15 // pred_check
          %p284 = pneg %p76
        $region56: #{tpu_custom_call.1} parent=15 // pred_check_branch
          %286 = sbr.rel (%p284) target = $region58
        $region57: #{tpu_custom_call.1} parent=15 // pred_region
          %s287 = sand.u32 %s66, 1
          %s288 = scalar_lea.sflag [#allocation5], %s287
          %s289 = sand.u32 %s66, 1
          %s290 = smul.addr %s289, 128
          %s291 = scalar_lea.vmem [#allocation4], %s290
          %s292 = smul.u32 16, %s24
          %294 = vsyncadd %s288, 0
          %s295 = smul.addr %s292, 8
          %s296 = scalar_lea.hbm %s1, %s295
          %s297 = sshll.u32 %s296, 4
          %s298 = int_to_ptr.hbm [resolvable:$true] %s297
          %s299 = sshll.u32 %s291, 4
          %s300 = int_to_ptr.vmem [resolvable:$true] %s299
          %305 = dma.hbm_to_vmem [thread:$0]  %s298, 2048, %s300, %s288, 128, 128, 8
        $region58: #{tpu_custom_call.1} parent=15 // pred_fallthru
          _
        // Predicated region
        $region59: #{tpu_custom_call.1} parent=15 // pred_check
          %p306 = pneg %p102
        $region60: #{tpu_custom_call.1} parent=15 // pred_check_branch
          %308 = sbr.rel (%p306) target = $region62
        $region61: #{tpu_custom_call.1} parent=15 // pred_region
          %s309 = smul.u32 16, %s24
          %p310 = scmp.lt.s32.totalorder %s309, 31
          %s311 = scalar_select %p310, %s309, 31
          %s312 = smul.addr %s311, 8
          %s313 = scalar_lea.vmem %s2, %s312
          %s314 = smul.u32 16, %s24
        $region62: #{tpu_custom_call.1} parent=15 // pred_fallthru
          _
        // Predicated region
        $region63: #{tpu_custom_call.1} parent=15 // pred_check
          %p315 = pneg %p128
        $region64: #{tpu_custom_call.1} parent=15 // pred_check_branch
          %317 = sbr.rel (%p315) target = $region66
        $region65: #{tpu_custom_call.1} parent=15 // pred_region
          %s318 = smul.u32 16, %s23
          %p319 = scmp.lt.s32.totalorder %s318, 31
          %s320 = scalar_select %p319, %s318, 31
          %s321 = smul.addr %s320, 8
          %s322 = scalar_lea.vmem %s3, %s321
          %s323 = smul.u32 16, %s23
        $region66: #{tpu_custom_call.1} parent=15 // pred_fallthru
          _
      $region16: #{tpu_custom_call.1} parent=5 // pred_fallthru
        _
      %p324 = scmp.le.s32.totalorder 1, %s16
      %p325 = scmp.lt.s32.totalorder %s16, 5
      %p326 = pnand %p324, %p325
      %p327 = pneg %p326
      // Predicated region
      $region67: #{tpu_custom_call.1} parent=5 // pred_check
        _
      $region68: #{tpu_custom_call.1} parent=5 // pred_check_branch
        %329 = sbr.rel (%p326) target = $region70
      $region69: #{tpu_custom_call.1} parent=5 // pred_region
        %s330 = ssub.s32 %s16, 1
        %s331 = sand.u32 %s43, 1
        %s332 = sand.u32 %s43, 1
        %s333 = smul.addr %s332, 128
        %s334 = scalar_lea.vmem [#allocation3], %s333
        // Predicated region
        $region71: #{tpu_custom_call.1} parent=69 // pred_check
          %p335 = pneg %p56
        $region72: #{tpu_custom_call.1} parent=69 // pred_check_branch
          %337 = sbr.rel (%p335) target = $region74
        $region73: #{tpu_custom_call.1} parent=69 // pred_region
          _
        $region74: #{tpu_custom_call.1} parent=69 // pred_fallthru
          _
        %s338 = sand.u32 %s69, 1
        %s339 = scalar_lea.sflag [#allocation5], %s338
        %s340 = sand.u32 %s69, 1
        %s341 = smul.addr %s340, 128
        %s342 = scalar_lea.vmem [#allocation4], %s341
        // Predicated region
        $region75: #{tpu_custom_call.1} parent=69 // pred_check
          %p343 = pneg %p82
        $region76: #{tpu_custom_call.1} parent=69 // pred_check_branch
          %345 = sbr.rel (%p343) target = $region78
        $region77: #{tpu_custom_call.1} parent=69 // pred_region
          %347 = dma.done %s339, 2048
        $region78: #{tpu_custom_call.1} parent=69 // pred_fallthru
          _
        %s348 = sand.u32 %s43, 1
        %s349 = sand.u32 %s43, 1
        %s350 = smul.addr %s349, 128
        %s351 = scalar_lea.vmem [#allocation3], %s350
        %p352 = pneg %p56
        %p353 = pneg %p53
        %s354 = sand.u32 %s69, 1
        %s355 = scalar_lea.sflag [#allocation5], %s354
        %s356 = sand.u32 %s69, 1
        %s357 = smul.addr %s356, 128
        %s358 = scalar_lea.vmem [#allocation4], %s357
        %p359 = pneg %p82
        %p360 = pneg %p79
        %s361 = smul.u32 16, %s26
        %p362 = scmp.lt.s32.totalorder %s361, 31
        %s363 = scalar_select %p362, %s361, 31
        %s364 = smul.addr %s363, 8
        %s365 = scalar_lea.vmem %s2, %s364
        %p366 = pneg %p108
        %p367 = pneg %p105
        %s368 = smul.u32 16, %s25
        %p369 = scmp.lt.s32.totalorder %s368, 31
        %s370 = scalar_select %p369, %s368, 31
        %s371 = smul.addr %s370, 8
        %s372 = scalar_lea.vmem %s3, %s371
        %p373 = pneg %p134
        %p374 = pneg %p131
        %p375 = pneg %p160
        %p376 = pneg %p157
        %s377 = sand.u32 %s147, 1
        %s378 = scalar_lea.sflag [#allocation6], %s377
        %s379 = sand.u32 %s147, 1
        %s380 = smul.addr %s379, 128
        %s381 = scalar_lea.vmem [#allocation7], %s380
        %s382 = smul.u32 16, %s25
        %s383 = smul.u32 16, %s26
        %s384 = smul.u32 16, %s26
        %p385 = scmp.lt.s32.totalorder %s384, 31
        %s386 = scalar_select %p385, %s384, 31
        %s387 = smul.addr %s386, 8
        %s388 = scalar_lea.vmem %s2, %s387
        %s389 = smul.u32 16, %s26
        %s390 = smul.u32 16, %s25
        %p391 = scmp.lt.s32.totalorder %s390, 31
        %s392 = scalar_select %p391, %s390, 31
        %s393 = smul.addr %s392, 8
        %s394 = scalar_lea.vmem %s3, %s393
        %s395 = smul.u32 16, %s25
        %s396 = smul.u32 16, %s25
        %p397 = scmp.eq.s32.totalorder %s26, 0
        // Predicated region
        $region79: #{tpu_custom_call.1} parent=69 // pred_check
          %p398 = pneg %p397
        $region80: #{tpu_custom_call.1} parent=69 // pred_check_branch
          %400 = sbr.rel (%p398) target = $region82
        $region81: #{tpu_custom_call.1} parent=69 // pred_region
          %401 = vst [vmem:[#allocation2] sm:$0xff] 0.0
          %402 = vst [vmem:[#allocation2 + $0x8] sm:$0xff] 0.0
          %403 = vst [vmem:[#allocation2 + $0x10] sm:$0xff] 0.0
          %404 = vst [vmem:[#allocation2 + $0x18] sm:$0xff] 0.0
          %405 = vst [vmem:[#allocation2 + $0x20] sm:$0xff] 0.0
          %406 = vst [vmem:[#allocation2 + $0x28] sm:$0xff] 0.0
          %407 = vst [vmem:[#allocation2 + $0x30] sm:$0xff] 0.0
          %408 = vst [vmem:[#allocation2 + $0x38] sm:$0xff] 0.0
          %409 = vst [vmem:[#allocation2 + $0x40] sm:$0xff] 0.0
          %410 = vst [vmem:[#allocation2 + $0x48] sm:$0xff] 0.0
          %411 = vst [vmem:[#allocation2 + $0x50] sm:$0xff] 0.0
          %412 = vst [vmem:[#allocation2 + $0x58] sm:$0xff] 0.0
          %413 = vst [vmem:[#allocation2 + $0x60] sm:$0xff] 0.0
          %414 = vst [vmem:[#allocation2 + $0x68] sm:$0xff] 0.0
          %415 = vst [vmem:[#allocation2 + $0x70] sm:$0xff] 0.0
          %416 = vst [vmem:[#allocation2 + $0x78] sm:$0xff] 0.0
        $region82: #{tpu_custom_call.1} parent=69 // pred_fallthru
          _
        %v417 = vld [vmem:[%s342] sm:$0xff]
        %v418 = vld [vmem:[%s342 + $0x8] sm:$0xff]
        %v419 = vld [vmem:[%s342 + $0x10] sm:$0xff]
        %v420 = vld [vmem:[%s342 + $0x18] sm:$0xff]
        %v421 = vld [vmem:[%s342 + $0x20] sm:$0xff]
        %v422 = vld [vmem:[%s342 + $0x28] sm:$0xff]
        %v423 = vld [vmem:[%s342 + $0x30] sm:$0xff]
        %v424 = vld [vmem:[%s342 + $0x38] sm:$0xff]
        %v425 = vld [vmem:[%s342 + $0x40] sm:$0xff]
        %v426 = vld [vmem:[%s342 + $0x48] sm:$0xff]
        %v427 = vld [vmem:[%s342 + $0x50] sm:$0xff]
        %v428 = vld [vmem:[%s342 + $0x58] sm:$0xff]
        %v429 = vld [vmem:[%s342 + $0x60] sm:$0xff]
        %v430 = vld [vmem:[%s342 + $0x68] sm:$0xff]
        %v431 = vld [vmem:[%s342 + $0x70] sm:$0xff]
        %v432 = vld [vmem:[%s342 + $0x78] sm:$0xff]
        %v433 = vld [vmem:[%s388] sm:$0xff]
        %v434 = vld [vmem:[%s388 + $0x8] sm:$0xff]
        %v435 = vld [vmem:[%s388 + $0x10] sm:$0xff]
        %v436 = vld [vmem:[%s388 + $0x18] sm:$0xff]
        %v437 = vld [vmem:[%s388 + $0x20] sm:$0xff]
        %v438 = vld [vmem:[%s388 + $0x28] sm:$0xff]
        %v439 = vld [vmem:[%s388 + $0x30] sm:$0xff]
        %v440 = vld [vmem:[%s388 + $0x38] sm:$0xff]
        %v441 = vld [vmem:[%s388 + $0x40] sm:$0xff]
        %v442 = vld [vmem:[%s388 + $0x48] sm:$0xff]
        %v443 = vld [vmem:[%s388 + $0x50] sm:$0xff]
        %v444 = vld [vmem:[%s388 + $0x58] sm:$0xff]
        %v445 = vld [vmem:[%s388 + $0x60] sm:$0xff]
        %v446 = vld [vmem:[%s388 + $0x68] sm:$0xff]
        %v447 = vld [vmem:[%s388 + $0x70] sm:$0xff]
        %v448 = vld [vmem:[%s388 + $0x78] sm:$0xff]
        %450 = vset.pattern.permute.xlu0 0
        %451 = vperm.xlu0 %450, %v433
        %v452 = vpop.permute.xlu0 %451
        %455 = vset.pattern.permute.xlu0 0
        %456 = vperm.xlu0 %455, %v434
        %v457 = vpop.permute.xlu0 %456
        %460 = vset.pattern.permute.xlu0 0
        %461 = vperm.xlu0 %460, %v435
        %v462 = vpop.permute.xlu0 %461
        %465 = vset.pattern.permute.xlu0 0
        %466 = vperm.xlu0 %465, %v436
        %v467 = vpop.permute.xlu0 %466
        %470 = vset.pattern.permute.xlu0 0
        %471 = vperm.xlu0 %470, %v437
        %v472 = vpop.permute.xlu0 %471
        %475 = vset.pattern.permute.xlu0 0
        %476 = vperm.xlu0 %475, %v438
        %v477 = vpop.permute.xlu0 %476
        %480 = vset.pattern.permute.xlu0 0
        %481 = vperm.xlu0 %480, %v439
        %v482 = vpop.permute.xlu0 %481
        %485 = vset.pattern.permute.xlu0 0
        %486 = vperm.xlu0 %485, %v440
        %v487 = vpop.permute.xlu0 %486
        %490 = vset.pattern.permute.xlu0 0
        %491 = vperm.xlu0 %490, %v441
        %v492 = vpop.permute.xlu0 %491
        %495 = vset.pattern.permute.xlu0 0
        %496 = vperm.xlu0 %495, %v442
        %v497 = vpop.permute.xlu0 %496
        %500 = vset.pattern.permute.xlu0 0
        %501 = vperm.xlu0 %500, %v443
        %v502 = vpop.permute.xlu0 %501
        %505 = vset.pattern.permute.xlu0 0
        %506 = vperm.xlu0 %505, %v444
        %v507 = vpop.permute.xlu0 %506
        %510 = vset.pattern.permute.xlu0 0
        %511 = vperm.xlu0 %510, %v445
        %v512 = vpop.permute.xlu0 %511
        %515 = vset.pattern.permute.xlu0 0
        %516 = vperm.xlu0 %515, %v446
        %v517 = vpop.permute.xlu0 %516
        %520 = vset.pattern.permute.xlu0 0
        %521 = vperm.xlu0 %520, %v447
        %v522 = vpop.permute.xlu0 %521
        %525 = vset.pattern.permute.xlu0 0
        %526 = vperm.xlu0 %525, %v448
        %v527 = vpop.permute.xlu0 %526
        %v529 = vmul.f32 %v417, %v452
        %v530 = vmul.f32 %v418, %v457
        %v531 = vmul.f32 %v419, %v462
        %v532 = vmul.f32 %v420, %v467
        %v533 = vmul.f32 %v421, %v472
        %v534 = vmul.f32 %v422, %v477
        %v535 = vmul.f32 %v423, %v482
        %v536 = vmul.f32 %v424, %v487
        %v537 = vmul.f32 %v425, %v492
        %v538 = vmul.f32 %v426, %v497
        %v539 = vmul.f32 %v427, %v502
        %v540 = vmul.f32 %v428, %v507
        %v541 = vmul.f32 %v429, %v512
        %v542 = vmul.f32 %v430, %v517
        %v543 = vmul.f32 %v431, %v522
        %v544 = vmul.f32 %v432, %v527
        %v545 = vld [vmem:[#allocation2] sm:$0xff]
        %v546 = vld [vmem:[#allocation2 + $0x8] sm:$0xff]
        %v547 = vld [vmem:[#allocation2 + $0x10] sm:$0xff]
        %v548 = vld [vmem:[#allocation2 + $0x18] sm:$0xff]
        %v549 = vld [vmem:[#allocation2 + $0x20] sm:$0xff]
        %v550 = vld [vmem:[#allocation2 + $0x28] sm:$0xff]
        %v551 = vld [vmem:[#allocation2 + $0x30] sm:$0xff]
        %v552 = vld [vmem:[#allocation2 + $0x38] sm:$0xff]
        %v553 = vld [vmem:[#allocation2 + $0x40] sm:$0xff]
        %v554 = vld [vmem:[#allocation2 + $0x48] sm:$0xff]
        %v555 = vld [vmem:[#allocation2 + $0x50] sm:$0xff]
        %v556 = vld [vmem:[#allocation2 + $0x58] sm:$0xff]
        %v557 = vld [vmem:[#allocation2 + $0x60] sm:$0xff]
        %v558 = vld [vmem:[#allocation2 + $0x68] sm:$0xff]
        %v559 = vld [vmem:[#allocation2 + $0x70] sm:$0xff]
        %v560 = vld [vmem:[#allocation2 + $0x78] sm:$0xff]
        %v561 = vld [vmem:[%s334] sm:$0xff]
        %v562 = vld [vmem:[%s334 + $0x8] sm:$0xff]
        %v563 = vld [vmem:[%s334 + $0x10] sm:$0xff]
        %v564 = vld [vmem:[%s334 + $0x18] sm:$0xff]
        %v565 = vld [vmem:[%s334 + $0x20] sm:$0xff]
        %v566 = vld [vmem:[%s334 + $0x28] sm:$0xff]
        %v567 = vld [vmem:[%s334 + $0x30] sm:$0xff]
        %v568 = vld [vmem:[%s334 + $0x38] sm:$0xff]
        %v569 = vld [vmem:[%s334 + $0x40] sm:$0xff]
        %v570 = vld [vmem:[%s334 + $0x48] sm:$0xff]
        %v571 = vld [vmem:[%s334 + $0x50] sm:$0xff]
        %v572 = vld [vmem:[%s334 + $0x58] sm:$0xff]
        %v573 = vld [vmem:[%s334 + $0x60] sm:$0xff]
        %v574 = vld [vmem:[%s334 + $0x68] sm:$0xff]
        %v575 = vld [vmem:[%s334 + $0x70] sm:$0xff]
        %v576 = vld [vmem:[%s334 + $0x78] sm:$0xff]
        %577 = vmatpush.msra.mxu0 %v544
        %578 = vmatpush.msra.mxu0 %v543
        %579 = vmatpush.msra.mxu0 %v542
        %580 = vmatpush.msra.mxu0 %v541
        %581 = vmatpush.msra.mxu0 %v540
        %582 = vmatpush.msra.mxu0 %v539
        %583 = vmatpush.msra.mxu0 %v538
        %584 = vmatpush.msra.mxu0 %v537
        %585 = vmatpush.msra.mxu0 %v536
        %586 = vmatpush.msra.mxu0 %v535
        %587 = vmatpush.msra.mxu0 %v534
        %588 = vmatpush.msra.mxu0 %v533
        %589 = vmatpush.msra.mxu0 %v532
        %590 = vmatpush.msra.mxu0 %v531
        %591 = vmatpush.msra.mxu0 %v530
        %592 = vmatpush.msra.mxu0 %v529
        %593 = vmatmul.f32.gmra.mxu0 %v561
        %v594 = vpop.f32.mrf.mxu0
        %v595 = vadd.f32 0.0, %v594
        %596 = vmatmul.f32.gmra.mxu0 %v562
        %v597 = vpop.f32.mrf.mxu0
        %v598 = vadd.f32 0.0, %v597
        %599 = vmatmul.f32.gmra.mxu0 %v563
        %v600 = vpop.f32.mrf.mxu0
        %v601 = vadd.f32 0.0, %v600
        %602 = vmatmul.f32.gmra.mxu0 %v564
        %v603 = vpop.f32.mrf.mxu0
        %v604 = vadd.f32 0.0, %v603
        %605 = vmatmul.f32.gmra.mxu0 %v565
        %v606 = vpop.f32.mrf.mxu0
        %v607 = vadd.f32 0.0, %v606
        %608 = vmatmul.f32.gmra.mxu0 %v566
        %v609 = vpop.f32.mrf.mxu0
        %v610 = vadd.f32 0.0, %v609
        %611 = vmatmul.f32.gmra.mxu0 %v567
        %v612 = vpop.f32.mrf.mxu0
        %v613 = vadd.f32 0.0, %v612
        %614 = vmatmul.f32.gmra.mxu0 %v568
        %v615 = vpop.f32.mrf.mxu0
        %v616 = vadd.f32 0.0, %v615
        %617 = vmatmul.f32.gmra.mxu0 %v569
        %v618 = vpop.f32.mrf.mxu0
        %v619 = vadd.f32 0.0, %v618
        %620 = vmatmul.f32.gmra.mxu0 %v570
        %v621 = vpop.f32.mrf.mxu0
        %v622 = vadd.f32 0.0, %v621
        %623 = vmatmul.f32.gmra.mxu0 %v571
        %v624 = vpop.f32.mrf.mxu0
        %v625 = vadd.f32 0.0, %v624
        %626 = vmatmul.f32.gmra.mxu0 %v572
        %v627 = vpop.f32.mrf.mxu0
        %v628 = vadd.f32 0.0, %v627
        %629 = vmatmul.f32.gmra.mxu0 %v573
        %v630 = vpop.f32.mrf.mxu0
        %v631 = vadd.f32 0.0, %v630
        %632 = vmatmul.f32.gmra.mxu0 %v574
        %v633 = vpop.f32.mrf.mxu0
        %v634 = vadd.f32 0.0, %v633
        %635 = vmatmul.f32.gmra.mxu0 %v575
        %v636 = vpop.f32.mrf.mxu0
        %v637 = vadd.f32 0.0, %v636
        %638 = vmatmul.f32.gmra.mxu0 %v576
        %v639 = vpop.f32.mrf.mxu0
        %v640 = vadd.f32 0.0, %v639
        %641 = vdwg.mxu0
        %v642 = vadd.f32 %v545, %v595
        %v643 = vadd.f32 %v546, %v598
        %v644 = vadd.f32 %v547, %v601
        %v645 = vadd.f32 %v548, %v604
        %v646 = vadd.f32 %v549, %v607
        %v647 = vadd.f32 %v550, %v610
        %v648 = vadd.f32 %v551, %v613
        %v649 = vadd.f32 %v552, %v616
        %v650 = vadd.f32 %v553, %v619
        %v651 = vadd.f32 %v554, %v622
        %v652 = vadd.f32 %v555, %v625
        %v653 = vadd.f32 %v556, %v628
        %v654 = vadd.f32 %v557, %v631
        %v655 = vadd.f32 %v558, %v634
        %v656 = vadd.f32 %v559, %v637
        %v657 = vadd.f32 %v560, %v640
        %658 = vst [vmem:[#allocation2] sm:$0xff] %v642
        %659 = vst [vmem:[#allocation2 + $0x8] sm:$0xff] %v643
        %660 = vst [vmem:[#allocation2 + $0x10] sm:$0xff] %v644
        %661 = vst [vmem:[#allocation2 + $0x18] sm:$0xff] %v645
        %662 = vst [vmem:[#allocation2 + $0x20] sm:$0xff] %v646
        %663 = vst [vmem:[#allocation2 + $0x28] sm:$0xff] %v647
        %664 = vst [vmem:[#allocation2 + $0x30] sm:$0xff] %v648
        %665 = vst [vmem:[#allocation2 + $0x38] sm:$0xff] %v649
        %666 = vst [vmem:[#allocation2 + $0x40] sm:$0xff] %v650
        %667 = vst [vmem:[#allocation2 + $0x48] sm:$0xff] %v651
        %668 = vst [vmem:[#allocation2 + $0x50] sm:$0xff] %v652
        %669 = vst [vmem:[#allocation2 + $0x58] sm:$0xff] %v653
        %670 = vst [vmem:[#allocation2 + $0x60] sm:$0xff] %v654
        %671 = vst [vmem:[#allocation2 + $0x68] sm:$0xff] %v655
        %672 = vst [vmem:[#allocation2 + $0x70] sm:$0xff] %v656
        %673 = vst [vmem:[#allocation2 + $0x78] sm:$0xff] %v657
        %p674 = scmp.eq.s32.totalorder %s26, 1
        // Predicated region
        $region83: #{tpu_custom_call.1} parent=69 // pred_check
          %p675 = pneg %p674
        $region84: #{tpu_custom_call.1} parent=69 // pred_check_branch
          %677 = sbr.rel (%p675) target = $region86
        $region85: #{tpu_custom_call.1} parent=69 // pred_region
          %v678 = vld [vmem:[#allocation2] sm:$0xff]
          %v679 = vld [vmem:[#allocation2 + $0x8] sm:$0xff]
          %v680 = vld [vmem:[#allocation2 + $0x10] sm:$0xff]
          %v681 = vld [vmem:[#allocation2 + $0x18] sm:$0xff]
          %v682 = vld [vmem:[#allocation2 + $0x20] sm:$0xff]
          %v683 = vld [vmem:[#allocation2 + $0x28] sm:$0xff]
          %v684 = vld [vmem:[#allocation2 + $0x30] sm:$0xff]
          %v685 = vld [vmem:[#allocation2 + $0x38] sm:$0xff]
          %v686 = vld [vmem:[#allocation2 + $0x40] sm:$0xff]
          %v687 = vld [vmem:[#allocation2 + $0x48] sm:$0xff]
          %v688 = vld [vmem:[#allocation2 + $0x50] sm:$0xff]
          %v689 = vld [vmem:[#allocation2 + $0x58] sm:$0xff]
          %v690 = vld [vmem:[#allocation2 + $0x60] sm:$0xff]
          %v691 = vld [vmem:[#allocation2 + $0x68] sm:$0xff]
          %v692 = vld [vmem:[#allocation2 + $0x70] sm:$0xff]
          %v693 = vld [vmem:[#allocation2 + $0x78] sm:$0xff]
          %v694 = vld [vmem:[%s394] sm:$0xff]
          %v695 = vld [vmem:[%s394 + $0x8] sm:$0xff]
          %v696 = vld [vmem:[%s394 + $0x10] sm:$0xff]
          %v697 = vld [vmem:[%s394 + $0x18] sm:$0xff]
          %v698 = vld [vmem:[%s394 + $0x20] sm:$0xff]
          %v699 = vld [vmem:[%s394 + $0x28] sm:$0xff]
          %v700 = vld [vmem:[%s394 + $0x30] sm:$0xff]
          %v701 = vld [vmem:[%s394 + $0x38] sm:$0xff]
          %v702 = vld [vmem:[%s394 + $0x40] sm:$0xff]
          %v703 = vld [vmem:[%s394 + $0x48] sm:$0xff]
          %v704 = vld [vmem:[%s394 + $0x50] sm:$0xff]
          %v705 = vld [vmem:[%s394 + $0x58] sm:$0xff]
          %v706 = vld [vmem:[%s394 + $0x60] sm:$0xff]
          %v707 = vld [vmem:[%s394 + $0x68] sm:$0xff]
          %v708 = vld [vmem:[%s394 + $0x70] sm:$0xff]
          %v709 = vld [vmem:[%s394 + $0x78] sm:$0xff]
          %711 = vset.pattern.permute.xlu0 0
          %712 = vperm.xlu0 %711, %v694
          %v713 = vpop.permute.xlu0 %712
          %716 = vset.pattern.permute.xlu0 0
          %717 = vperm.xlu0 %716, %v695
          %v718 = vpop.permute.xlu0 %717
          %721 = vset.pattern.permute.xlu0 0
          %722 = vperm.xlu0 %721, %v696
          %v723 = vpop.permute.xlu0 %722
          %726 = vset.pattern.permute.xlu0 0
          %727 = vperm.xlu0 %726, %v697
          %v728 = vpop.permute.xlu0 %727
          %731 = vset.pattern.permute.xlu0 0
          %732 = vperm.xlu0 %731, %v698
          %v733 = vpop.permute.xlu0 %732
          %736 = vset.pattern.permute.xlu0 0
          %737 = vperm.xlu0 %736, %v699
          %v738 = vpop.permute.xlu0 %737
          %741 = vset.pattern.permute.xlu0 0
          %742 = vperm.xlu0 %741, %v700
          %v743 = vpop.permute.xlu0 %742
          %746 = vset.pattern.permute.xlu0 0
          %747 = vperm.xlu0 %746, %v701
          %v748 = vpop.permute.xlu0 %747
          %751 = vset.pattern.permute.xlu0 0
          %752 = vperm.xlu0 %751, %v702
          %v753 = vpop.permute.xlu0 %752
          %756 = vset.pattern.permute.xlu0 0
          %757 = vperm.xlu0 %756, %v703
          %v758 = vpop.permute.xlu0 %757
          %761 = vset.pattern.permute.xlu0 0
          %762 = vperm.xlu0 %761, %v704
          %v763 = vpop.permute.xlu0 %762
          %766 = vset.pattern.permute.xlu0 0
          %767 = vperm.xlu0 %766, %v705
          %v768 = vpop.permute.xlu0 %767
          %771 = vset.pattern.permute.xlu0 0
          %772 = vperm.xlu0 %771, %v706
          %v773 = vpop.permute.xlu0 %772
          %776 = vset.pattern.permute.xlu0 0
          %777 = vperm.xlu0 %776, %v707
          %v778 = vpop.permute.xlu0 %777
          %781 = vset.pattern.permute.xlu0 0
          %782 = vperm.xlu0 %781, %v708
          %v783 = vpop.permute.xlu0 %782
          %786 = vset.pattern.permute.xlu0 0
          %787 = vperm.xlu0 %786, %v709
          %v788 = vpop.permute.xlu0 %787
          %v790 = vmul.f32 %v678, %v713
          %v791 = vmul.f32 %v679, %v718
          %v792 = vmul.f32 %v680, %v723
          %v793 = vmul.f32 %v681, %v728
          %v794 = vmul.f32 %v682, %v733
          %v795 = vmul.f32 %v683, %v738
          %v796 = vmul.f32 %v684, %v743
          %v797 = vmul.f32 %v685, %v748
          %v798 = vmul.f32 %v686, %v753
          %v799 = vmul.f32 %v687, %v758
          %v800 = vmul.f32 %v688, %v763
          %v801 = vmul.f32 %v689, %v768
          %v802 = vmul.f32 %v690, %v773
          %v803 = vmul.f32 %v691, %v778
          %v804 = vmul.f32 %v692, %v783
          %v805 = vmul.f32 %v693, %v788
          %806 = vst [vmem:[%s381] sm:$0xff] %v790
          %807 = vst [vmem:[%s381 + $0x8] sm:$0xff] %v791
          %808 = vst [vmem:[%s381 + $0x10] sm:$0xff] %v792
          %809 = vst [vmem:[%s381 + $0x18] sm:$0xff] %v793
          %810 = vst [vmem:[%s381 + $0x20] sm:$0xff] %v794
          %811 = vst [vmem:[%s381 + $0x28] sm:$0xff] %v795
          %812 = vst [vmem:[%s381 + $0x30] sm:$0xff] %v796
          %813 = vst [vmem:[%s381 + $0x38] sm:$0xff] %v797
          %814 = vst [vmem:[%s381 + $0x40] sm:$0xff] %v798
          %815 = vst [vmem:[%s381 + $0x48] sm:$0xff] %v799
          %816 = vst [vmem:[%s381 + $0x50] sm:$0xff] %v800
          %817 = vst [vmem:[%s381 + $0x58] sm:$0xff] %v801
          %818 = vst [vmem:[%s381 + $0x60] sm:$0xff] %v802
          %819 = vst [vmem:[%s381 + $0x68] sm:$0xff] %v803
          %820 = vst [vmem:[%s381 + $0x70] sm:$0xff] %v804
          %821 = vst [vmem:[%s381 + $0x78] sm:$0xff] %v805
        $region86: #{tpu_custom_call.1} parent=69 // pred_fallthru
          _
        %s822 = sand.u32 %s147, 1
        %s823 = scalar_lea.sflag [#allocation6], %s822
        %s824 = sand.u32 %s147, 1
        %s825 = smul.addr %s824, 128
        %s826 = scalar_lea.vmem [#allocation7], %s825
        // Predicated region
        $region87: #{tpu_custom_call.1} parent=69 // pred_check
          %p827 = pneg %p157
        $region88: #{tpu_custom_call.1} parent=69 // pred_check_branch
          %829 = sbr.rel (%p827) target = $region90
        $region89: #{tpu_custom_call.1} parent=69 // pred_region
          %s830 = smul.u32 16, %s25
          %832 = vsyncadd %s823, 0
          %s833 = smul.addr %s830, 8
          %s834 = scalar_lea.hbm %s4, %s833
          %s835 = sshll.u32 %s826, 4
          %s836 = int_to_ptr.vmem [resolvable:$true] %s835
          %s837 = sshll.u32 %s834, 4
          %s838 = int_to_ptr.hbm [resolvable:$true] %s837
          %843 = dma.vmem_to_hbm [thread:$0]  %s836, 2048, %s838, %s823, 128, 128, 8
        $region90: #{tpu_custom_call.1} parent=69 // pred_fallthru
          _
      $region70: #{tpu_custom_call.1} parent=5 // pred_fallthru
        _
      %p844 = scmp.le.s32.totalorder 2, %s16
      // Predicated region
      $region91: #{tpu_custom_call.1} parent=5 // pred_check
        %p845 = pneg %p844
      $region92: #{tpu_custom_call.1} parent=5 // pred_check_branch
        %847 = sbr.rel (%p845) target = $region94
      $region93: #{tpu_custom_call.1} parent=5 // pred_region
        %s848 = ssub.s32 %s16, 2
        // Predicated region
        $region95: #{tpu_custom_call.1} parent=93 // pred_check
          %p849 = pneg %p163
        $region96: #{tpu_custom_call.1} parent=93 // pred_check_branch
          %851 = sbr.rel (%p849) target = $region98
        $region97: #{tpu_custom_call.1} parent=93 // pred_region
          %s852 = sand.u32 %s148, 1
          %s853 = scalar_lea.sflag [#allocation6], %s852
          %s854 = sand.u32 %s148, 1
          %s855 = smul.addr %s854, 128
          %s856 = scalar_lea.vmem [#allocation7], %s855
          %858 = dma.done %s853, 2048
        $region98: #{tpu_custom_call.1} parent=93 // pred_fallthru
          _
      $region94: #{tpu_custom_call.1} parent=5 // pred_fallthru
        _
    $region6: #{tpu_custom_call.1} parent=1 // loop_footer
      %s20 = sadd.s32 1, %s16
    $region7: #{tpu_custom_call.1} parent=1 // loop_footer_branch
      %15 = sbr.rel target = $region3
    $region8: #{tpu_custom_call.1} parent=1 // loop_exit
      _
    %859 = vsyncpa [#allocation5], 1
    %s860 = scalar_lea.sflag [#allocation5], 1
    %861 = vsyncpa %s860, 1
    %862 = vsyncpa [#allocation6], 1
    %s863 = scalar_lea.sflag [#allocation6], 1
    %864 = vsyncpa %s863, 1

</llo_original>
